<compile_context>
chip_gen: v7x
topology: tpu7x:2x2x1
jax: 0.10.0
libtpu: 0.0.40
codegen_flags: <defaults>
</compile_context>

<pallas_src>
import math
import functools

import jax
import jax.numpy as jnp
from jax.experimental import pallas as pl
from jax.experimental.pallas import tpu as pltpu

LANE = 128


def _round_up(x, m):
    return ((x + m - 1) // m) * m


def _ffnn_kernel(xt_ref, w_ref, b_ref, o_ref, *, layer_dims, n_nodes, chunk,
                 approx_sigmoid):
    """One batch tile of the fused MLP.

    xt_ref : (input_dim, BT)       activations; features on sublanes, batch on lanes
    w_ref  : (n_nodes * L, IN_PAD) packed weights; layer l in rows
                                   [n_nodes*l, n_nodes*l + out_dim_l).  Hidden
                                   layers are stored TRANSPOSED (out, in); the
                                   final (n_nodes -> 1) layer is stored as a
                                   COLUMN (in, 1) for the sublane-reduce path.
    b_ref  : (n_nodes, L)          packed biases; layer l in column l
    o_ref  : (1, BT)               lane-dense sigmoid output
    """
    n_layers = len(layer_dims)
    bt = o_ref.shape[-1]
    n_chunks = bt // chunk

    # Hoist the tiny, VMEM-resident weights/biases out of the lane-chunk loop
    # so they sit in vregs (or cheap loop-invariant loads) across all chunks.
    wts, biases = [], []
    for l, (in_dim, out_dim) in enumerate(layer_dims):
        r0 = n_nodes * l
        if l == n_layers - 1 and out_dim == 1:
            wts.append(w_ref[r0:r0 + in_dim, 0:1].astype(jnp.float32))       # (in, 1)
        else:
            wts.append(w_ref[r0:r0 + out_dim, 0:in_dim].astype(jnp.float32))  # (out, in)
        biases.append(b_ref[0:out_dim, l:l + 1].astype(jnp.float32))          # (out, 1)

    # Inner lane-chunk loop: keeps the full 8-layer FMA chain register-resident
    # (working set ~8-16 vregs) instead of spilling a 64-vreg full-tile value
    # through the vector-store slot.
    @pl.loop(0, n_chunks)
    def _(c):
        off = pl.multiple_of(c * chunk, chunk)
        h = xt_ref[:, pl.ds(off, chunk)].astype(jnp.float32)   # (in_dim0, chunk)

        for l, (in_dim, out_dim) in enumerate(layer_dims):
            wt, bias = wts[l], biases[l]
            if l == n_layers - 1 and out_dim == 1:
                # Last (n_nodes -> 1) layer: lane-broadcast multiply + cross-
                # sublane reduction (XLU) instead of FMAs on a 1/8-full row.
                h = jnp.sum(h * wt, axis=0, keepdims=True) + bias   # (1, chunk)
            else:
                # VPU outer-product FMAs:  acc = sum_i wt[:, i] (x) h[i, :]
                # (out_dim, 1) broadcasts along lanes, (1, chunk) along
                # sublanes; bias added once at the end (no broadcast_to).
                acc = wt[:, 0:1] * h[0:1, :]
                for i in range(1, in_dim):
                    acc = acc + wt[:, i:i + 1] * h[i:i + 1, :]
                acc = acc + bias
                h = jnp.maximum(acc, 0.0) if l < n_layers - 1 else acc

        # Numerically-stable sigmoid on the EUP:
        #   e = exp(-|h|) in (0, 1];  sigmoid = where(h >= 0, 1, e) / (1 + e)
        # No overflow for large |h|; reciprocal argument is in (1, 2].
        e = jnp.exp(-jnp.abs(h))
        num = jnp.where(h >= 0.0, 1.0, e)
        inv = pl.reciprocal(1.0 + e, approx=approx_sigmoid)
        o_ref[:, pl.ds(off, chunk)] = (num * inv).astype(o_ref.dtype)


def _pack_params(params, n_nodes):
    """Pack the 8 tiny (W, b) pairs into one weight slab and one bias slab."""
    in_dims = [w.shape[0] for w, _ in params]
    in_pad = max(max(in_dims), n_nodes)
    n_layers = len(params)
    w_rows, b_cols = [], []
    for l, (w, b) in enumerate(params):
        fan_in, fan_out = w.shape
        if l == n_layers - 1 and fan_out == 1:
            # Final layer stored as a column (fan_in, 1): the kernel multiplies
            # it lane-broadcast against h and reduces across sublanes, with no
            # in-kernel transpose.
            wl = jnp.asarray(w, jnp.float32)                                 # (in, 1)
            wl = jnp.pad(wl, ((0, n_nodes - fan_in), (0, in_pad - 1)))
        else:
            wl = jnp.asarray(w, jnp.float32).T                               # (out, in)
            wl = jnp.pad(wl, ((0, n_nodes - fan_out), (0, in_pad - fan_in)))
        w_rows.append(wl)
        b_cols.append(jnp.pad(jnp.asarray(b, jnp.float32).reshape(-1),
                              (0, n_nodes - fan_out)))
    wpack = jnp.concatenate(w_rows, axis=0)                          # (n_nodes*L, in_pad)
    bpack = jnp.stack(b_cols, axis=1)                                # (n_nodes, L)
    layer_dims = tuple((w.shape[0], w.shape[1]) for w, _ in params)  # (in, out) per layer
    return wpack, bpack, layer_dims


@functools.partial(
    jax.jit,
    static_argnames=("batch_tile", "lane_chunk", "hbm_dtype", "approx_sigmoid"))
def ffnn_classification_c(x, params, *, batch_tile=32768, lane_chunk=512,
                          hbm_dtype=None, approx_sigmoid=True):
    """Fused forward pass.  x: (batch, input_dim) f32  ->  (batch, 1) f32.

    params:         list of 8 (W, b) pairs, W shaped (in, out), b shaped (1, out).
    batch_tile:     lanes per grid step (rounded to whole lane-chunks).
    lane_chunk:     lanes per in-kernel inner-loop chunk (multiple of 128).
    hbm_dtype:      optional narrow dtype (e.g. jnp.bfloat16) used only as the
                    HBM format of x; in-kernel math stays f32 on every chip.
    approx_sigmoid: use the EUP approximate reciprocal in the sigmoid epilogue.
    """
    batch, input_dim = x.shape
    n_nodes = params[0][0].shape[1]
    wpack, bpack, layer_dims = _pack_params(params, n_nodes)

    # --- tile / chunk selection -------------------------------------------
    batch_lanes = _round_up(batch, LANE)
    bt = _round_up(min(batch_tile, batch_lanes), LANE)
    # v7x: ensure >= 2 grid steps whenever the batch allows it, so both
    # TensorCores get work under dimension_semantics=("parallel",).
    if batch_lanes >= 2 * LANE:
        bt = min(bt, _round_up(-(-batch_lanes // 2), LANE))
    chunk = min(lane_chunk, bt)          # inner lane-chunk (multiple of 128)
    bt = _round_up(bt, chunk)            # tile covers a whole number of chunks
    assert bt % chunk == 0
    batch_p = _round_up(batch, bt)
    grid = (batch_p // bt,)

    # --- layout plumbing (fused into one HBM pass under jit) ---------------
    # Optional narrow-cast happens BEFORE the transpose so the transposed copy
    # is written at half the bytes; batch goes to the lane axis end-to-end.
    if hbm_dtype is not None:
        x = x.astype(hbm_dtype)
    xt = jnp.pad(x, ((0, batch_p - batch), (0, 0))).T                # (input_dim, batch_p)

    kernel = functools.partial(_ffnn_kernel, layer_dims=layer_dims,
                               n_nodes=n_nodes, chunk=chunk,
                               approx_sigmoid=approx_sigmoid)

    out = pl.pallas_call(
        kernel,
        out_shape=jax.ShapeDtypeStruct((1, batch_p), jnp.float32),
        grid=grid,
        in_specs=[
            # x: streamed, double-buffered across the batch grid
            pl.BlockSpec((input_dim, bt), lambda i: (0, i)),
            # packed weights / biases: constant index_map -> resident in VMEM
            pl.BlockSpec(wpack.shape, lambda i: (0, 0)),
            pl.BlockSpec(bpack.shape, lambda i: (0, 0)),
        ],
        out_specs=pl.BlockSpec((1, bt), lambda i: (0, i)),
        compiler_params=pltpu.CompilerParams(
            # batch tiles are independent -> both TensorCores on v7x
            dimension_semantics=("parallel",),
        ),
    )(xt, wpack, bpack)

    return out[0, :batch].reshape(batch, 1)


def init_params(key, input_dim, n_nodes_per_layer=8):
    """nn.Linear-style init U(-1/sqrt(fan_in), 1/sqrt(fan_in)); W stored (in, out)."""
    dims = [(input_dim, n_nodes_per_layer)] + \
           [(n_nodes_per_layer, n_nodes_per_layer)] * 6 + \
           [(n_nodes_per_layer, 1)]
    params = []
    for (fan_in, fan_out) in dims:
        key, kw, kb = jax.random.split(key, 3)
        bound = 1.0 / math.sqrt(fan_in)
        w = jax.random.uniform(kw, (fan_in, fan_out), jnp.float32, -bound, bound)
        b = jax.random.uniform(kb, (1, fan_out), jnp.float32, -bound, bound)
        params.append((w, b))
    return params


def reference_forward(x, params):
    h = x
    for i, (w, b) in enumerate(params):
        h = h @ w + b
        if i < len(params) - 1:
            h = jnp.maximum(h, 0.0)
    return jax.nn.sigmoid(h)


if __name__ == "__main__":
    key = jax.random.PRNGKey(0)
    key, kx = jax.random.split(key)

    input_dim = 16
    n_nodes = 8
    params = init_params(key, input_dim, n_nodes)

    # Check 1: tiny batch (single tile, single chunk), exact sigmoid, f32.
    x_small = jax.random.normal(kx, (2, input_dim), jnp.float32)
    out = jax.block_until_ready(
        ffnn_classification_c(x_small, params, approx_sigmoid=False))
    ref = reference_forward(x_small, params)
    assert out.shape == (2, 1), out.shape
    assert jnp.allclose(out, ref, atol=1e-5, rtol=1e-5), (out, ref)

    # Check 2: multi-tile grid + multi-chunk inner loop + padding, bf16 HBM
    # format for x (compute stays f32 in-kernel).
    key, kx2 = jax.random.split(key)
    x_big = jax.random.normal(kx2, (300, input_dim), jnp.float32)
    out2 = jax.block_until_ready(
        ffnn_classification_c(x_big, params, lane_chunk=128,
                              hbm_dtype=jnp.bfloat16))
    x_big_rounded = x_big.astype(jnp.bfloat16).astype(jnp.float32)
    ref2 = reference_forward(x_big_rounded, params)
    assert out2.shape == (300, 1), out2.shape
    assert jnp.allclose(out2, ref2, atol=5e-3, rtol=1e-3), \
        float(jnp.max(jnp.abs(out2 - ref2)))

    # Check 3: default settings (bt clamped for >=2 grid steps, 512-lane
    # chunks, approximate EUP reciprocal), f32 inputs.
    key, kx3 = jax.random.split(key)
    x_mid = jax.random.normal(kx3, (2048, input_dim), jnp.float32)
    out3 = jax.block_until_ready(ffnn_classification_c(x_mid, params))
    ref3 = reference_forward(x_mid, params)
    assert out3.shape == (2048, 1), out3.shape
    assert jnp.allclose(out3, ref3, atol=2e-3, rtol=1e-3), \
        float(jnp.max(jnp.abs(out3 - ref3)))

    print("KERNEL_OK")
</pallas_src>

<mosaic_0001>
module attributes {stable_mosaic.version = 11 : i64} {
  func.func @_ffnn_kernel(%arg0: i32, %arg1: memref<16x128xf32, #tpu.memory_space<vmem>>, %arg2: memref<64x16xf32, #tpu.memory_space<vmem>>, %arg3: memref<8x8xf32, #tpu.memory_space<vmem>>, %arg4: memref<1x128xf32, #tpu.memory_space<vmem>>) attributes {dimension_semantics = [#tpu.dimension_semantics<parallel>], iteration_bounds = array<i64: 1>, scalar_prefetch = 0 : i64, scratch_operands = 0 : i64, tpu.core_type = #tpu.core_type<tc>, window_params = [{transform_indices = @transform_0, window_bounds = array<i64: 16, 128>}, {pipeline_mode = #tpu.pipeline_mode<synchronous>, transform_indices = @transform_1, window_bounds = array<i64: 64, 16>}, {pipeline_mode = #tpu.pipeline_mode<synchronous>, transform_indices = @transform_2, window_bounds = array<i64: 8, 8>}, {transform_indices = @transform_3, window_bounds = array<i64: 1, 128>}]} {
    %c0 = arith.constant 0 : index
    %c0_0 = arith.constant 0 : index
    %0 = vector.load %arg2[%c0, %c0_0] : memref<64x16xf32, #tpu.memory_space<vmem>>, vector<8x16xf32>
    %c0_1 = arith.constant 0 : index
    %c0_2 = arith.constant 0 : index
    %1 = vector.load %arg3[%c0_1, %c0_2] : memref<8x8xf32, #tpu.memory_space<vmem>>, vector<8x1xf32>
    %c8 = arith.constant 8 : index
    %c0_3 = arith.constant 0 : index
    %2 = vector.load %arg2[%c8, %c0_3] : memref<64x16xf32, #tpu.memory_space<vmem>>, vector<8x8xf32>
    %c0_4 = arith.constant 0 : index
    %c1 = arith.constant 1 : index
    %3 = vector.load %arg3[%c0_4, %c1] : memref<8x8xf32, #tpu.memory_space<vmem>>, vector<8x1xf32>
    %c16 = arith.constant 16 : index
    %c0_5 = arith.constant 0 : index
    %4 = vector.load %arg2[%c16, %c0_5] : memref<64x16xf32, #tpu.memory_space<vmem>>, vector<8x8xf32>
    %c0_6 = arith.constant 0 : index
    %c2 = arith.constant 2 : index
    %5 = vector.load %arg3[%c0_6, %c2] : memref<8x8xf32, #tpu.memory_space<vmem>>, vector<8x1xf32>
    %c24 = arith.constant 24 : index
    %c0_7 = arith.constant 0 : index
    %6 = vector.load %arg2[%c24, %c0_7] : memref<64x16xf32, #tpu.memory_space<vmem>>, vector<8x8xf32>
    %c0_8 = arith.constant 0 : index
    %c3 = arith.constant 3 : index
    %7 = vector.load %arg3[%c0_8, %c3] : memref<8x8xf32, #tpu.memory_space<vmem>>, vector<8x1xf32>
    %c32 = arith.constant 32 : index
    %c0_9 = arith.constant 0 : index
    %8 = vector.load %arg2[%c32, %c0_9] : memref<64x16xf32, #tpu.memory_space<vmem>>, vector<8x8xf32>
    %c0_10 = arith.constant 0 : index
    %c4 = arith.constant 4 : index
    %9 = vector.load %arg3[%c0_10, %c4] : memref<8x8xf32, #tpu.memory_space<vmem>>, vector<8x1xf32>
    %c40 = arith.constant 40 : index
    %c0_11 = arith.constant 0 : index
    %10 = vector.load %arg2[%c40, %c0_11] : memref<64x16xf32, #tpu.memory_space<vmem>>, vector<8x8xf32>
    %c0_12 = arith.constant 0 : index
    %c5 = arith.constant 5 : index
    %11 = vector.load %arg3[%c0_12, %c5] : memref<8x8xf32, #tpu.memory_space<vmem>>, vector<8x1xf32>
    %c48 = arith.constant 48 : index
    %c0_13 = arith.constant 0 : index
    %12 = vector.load %arg2[%c48, %c0_13] : memref<64x16xf32, #tpu.memory_space<vmem>>, vector<8x8xf32>
    %c0_14 = arith.constant 0 : index
    %c6 = arith.constant 6 : index
    %13 = vector.load %arg3[%c0_14, %c6] : memref<8x8xf32, #tpu.memory_space<vmem>>, vector<8x1xf32>
    %c56 = arith.constant 56 : index
    %c0_15 = arith.constant 0 : index
    %14 = vector.load %arg2[%c56, %c0_15] : memref<64x16xf32, #tpu.memory_space<vmem>>, vector<8x1xf32>
    %c0_16 = arith.constant 0 : index
    %c7 = arith.constant 7 : index
    %15 = vector.load %arg3[%c0_16, %c7] : memref<8x8xf32, #tpu.memory_space<vmem>>, vector<1x1xf32>
    %c0_i32 = arith.constant 0 : i32
    %c1_i32 = arith.constant 1 : i32
    %16 = arith.muli %c0_i32, %c1_i32 : i32
    %c0_i32_17 = arith.constant 0 : i32
    %17 = arith.addi %c0_i32_17, %16 : i32
    %c128_i32 = arith.constant 128 : i32
    %18 = arith.muli %17, %c128_i32 : i32
    %19 = tpu.assume_multiple %18, 128 : i32
    %c0_18 = arith.constant 0 : index
    %20 = arith.index_cast %19 : i32 to index
    %21 = vector.load %arg1[%c0_18, %20] : memref<16x128xf32, #tpu.memory_space<vmem>>, vector<16x128xf32>
    %22 = vector.extract_strided_slice %0 {offsets = [0, 0], sizes = [8, 1], strides = [1, 1]} : vector<8x16xf32> to vector<8x1xf32>
    %23 = vector.extract_strided_slice %21 {offsets = [0, 0], sizes = [1, 128], strides = [1, 1]} : vector<16x128xf32> to vector<1x128xf32>
    %24 = vector.broadcast %22 : vector<8x1xf32> to vector<8x128xf32>
    %25 = vector.broadcast %23 : vector<1x128xf32> to vector<8x128xf32>
    %26 = arith.mulf %24, %25 : vector<8x128xf32>
    %27 = vector.extract_strided_slice %0 {offsets = [0, 1], sizes = [8, 1], strides = [1, 1]} : vector<8x16xf32> to vector<8x1xf32>
    %28 = vector.extract_strided_slice %21 {offsets = [1, 0], sizes = [1, 128], strides = [1, 1]} : vector<16x128xf32> to vector<1x128xf32>
    %29 = vector.broadcast %27 : vector<8x1xf32> to vector<8x128xf32>
    %30 = vector.broadcast %28 : vector<1x128xf32> to vector<8x128xf32>
    %31 = arith.mulf %29, %30 : vector<8x128xf32>
    %32 = arith.addf %26, %31 : vector<8x128xf32>
    %33 = vector.extract_strided_slice %0 {offsets = [0, 2], sizes = [8, 1], strides = [1, 1]} : vector<8x16xf32> to vector<8x1xf32>
    %34 = vector.extract_strided_slice %21 {offsets = [2, 0], sizes = [1, 128], strides = [1, 1]} : vector<16x128xf32> to vector<1x128xf32>
    %35 = vector.broadcast %33 : vector<8x1xf32> to vector<8x128xf32>
    %36 = vector.broadcast %34 : vector<1x128xf32> to vector<8x128xf32>
    %37 = arith.mulf %35, %36 : vector<8x128xf32>
    %38 = arith.addf %32, %37 : vector<8x128xf32>
    %39 = vector.extract_strided_slice %0 {offsets = [0, 3], sizes = [8, 1], strides = [1, 1]} : vector<8x16xf32> to vector<8x1xf32>
    %40 = vector.extract_strided_slice %21 {offsets = [3, 0], sizes = [1, 128], strides = [1, 1]} : vector<16x128xf32> to vector<1x128xf32>
    %41 = vector.broadcast %39 : vector<8x1xf32> to vector<8x128xf32>
    %42 = vector.broadcast %40 : vector<1x128xf32> to vector<8x128xf32>
    %43 = arith.mulf %41, %42 : vector<8x128xf32>
    %44 = arith.addf %38, %43 : vector<8x128xf32>
    %45 = vector.extract_strided_slice %0 {offsets = [0, 4], sizes = [8, 1], strides = [1, 1]} : vector<8x16xf32> to vector<8x1xf32>
    %46 = vector.extract_strided_slice %21 {offsets = [4, 0], sizes = [1, 128], strides = [1, 1]} : vector<16x128xf32> to vector<1x128xf32>
    %47 = vector.broadcast %45 : vector<8x1xf32> to vector<8x128xf32>
    %48 = vector.broadcast %46 : vector<1x128xf32> to vector<8x128xf32>
    %49 = arith.mulf %47, %48 : vector<8x128xf32>
    %50 = arith.addf %44, %49 : vector<8x128xf32>
    %51 = vector.extract_strided_slice %0 {offsets = [0, 5], sizes = [8, 1], strides = [1, 1]} : vector<8x16xf32> to vector<8x1xf32>
    %52 = vector.extract_strided_slice %21 {offsets = [5, 0], sizes = [1, 128], strides = [1, 1]} : vector<16x128xf32> to vector<1x128xf32>
    %53 = vector.broadcast %51 : vector<8x1xf32> to vector<8x128xf32>
    %54 = vector.broadcast %52 : vector<1x128xf32> to vector<8x128xf32>
    %55 = arith.mulf %53, %54 : vector<8x128xf32>
    %56 = arith.addf %50, %55 : vector<8x128xf32>
    %57 = vector.extract_strided_slice %0 {offsets = [0, 6], sizes = [8, 1], strides = [1, 1]} : vector<8x16xf32> to vector<8x1xf32>
    %58 = vector.extract_strided_slice %21 {offsets = [6, 0], sizes = [1, 128], strides = [1, 1]} : vector<16x128xf32> to vector<1x128xf32>
    %59 = vector.broadcast %57 : vector<8x1xf32> to vector<8x128xf32>
    %60 = vector.broadcast %58 : vector<1x128xf32> to vector<8x128xf32>
    %61 = arith.mulf %59, %60 : vector<8x128xf32>
    %62 = arith.addf %56, %61 : vector<8x128xf32>
    %63 = vector.extract_strided_slice %0 {offsets = [0, 7], sizes = [8, 1], strides = [1, 1]} : vector<8x16xf32> to vector<8x1xf32>
    %64 = vector.extract_strided_slice %21 {offsets = [7, 0], sizes = [1, 128], strides = [1, 1]} : vector<16x128xf32> to vector<1x128xf32>
    %65 = vector.broadcast %63 : vector<8x1xf32> to vector<8x128xf32>
    %66 = vector.broadcast %64 : vector<1x128xf32> to vector<8x128xf32>
    %67 = arith.mulf %65, %66 : vector<8x128xf32>
    %68 = arith.addf %62, %67 : vector<8x128xf32>
    %69 = vector.extract_strided_slice %0 {offsets = [0, 8], sizes = [8, 1], strides = [1, 1]} : vector<8x16xf32> to vector<8x1xf32>
    %70 = vector.extract_strided_slice %21 {offsets = [8, 0], sizes = [1, 128], strides = [1, 1]} : vector<16x128xf32> to vector<1x128xf32>
    %71 = vector.broadcast %69 : vector<8x1xf32> to vector<8x128xf32>
    %72 = vector.broadcast %70 : vector<1x128xf32> to vector<8x128xf32>
    %73 = arith.mulf %71, %72 : vector<8x128xf32>
    %74 = arith.addf %68, %73 : vector<8x128xf32>
    %75 = vector.extract_strided_slice %0 {offsets = [0, 9], sizes = [8, 1], strides = [1, 1]} : vector<8x16xf32> to vector<8x1xf32>
    %76 = vector.extract_strided_slice %21 {offsets = [9, 0], sizes = [1, 128], strides = [1, 1]} : vector<16x128xf32> to vector<1x128xf32>
    %77 = vector.broadcast %75 : vector<8x1xf32> to vector<8x128xf32>
    %78 = vector.broadcast %76 : vector<1x128xf32> to vector<8x128xf32>
    %79 = arith.mulf %77, %78 : vector<8x128xf32>
    %80 = arith.addf %74, %79 : vector<8x128xf32>
    %81 = vector.extract_strided_slice %0 {offsets = [0, 10], sizes = [8, 1], strides = [1, 1]} : vector<8x16xf32> to vector<8x1xf32>
    %82 = vector.extract_strided_slice %21 {offsets = [10, 0], sizes = [1, 128], strides = [1, 1]} : vector<16x128xf32> to vector<1x128xf32>
    %83 = vector.broadcast %81 : vector<8x1xf32> to vector<8x128xf32>
    %84 = vector.broadcast %82 : vector<1x128xf32> to vector<8x128xf32>
    %85 = arith.mulf %83, %84 : vector<8x128xf32>
    %86 = arith.addf %80, %85 : vector<8x128xf32>
    %87 = vector.extract_strided_slice %0 {offsets = [0, 11], sizes = [8, 1], strides = [1, 1]} : vector<8x16xf32> to vector<8x1xf32>
    %88 = vector.extract_strided_slice %21 {offsets = [11, 0], sizes = [1, 128], strides = [1, 1]} : vector<16x128xf32> to vector<1x128xf32>
    %89 = vector.broadcast %87 : vector<8x1xf32> to vector<8x128xf32>
    %90 = vector.broadcast %88 : vector<1x128xf32> to vector<8x128xf32>
    %91 = arith.mulf %89, %90 : vector<8x128xf32>
    %92 = arith.addf %86, %91 : vector<8x128xf32>
    %93 = vector.extract_strided_slice %0 {offsets = [0, 12], sizes = [8, 1], strides = [1, 1]} : vector<8x16xf32> to vector<8x1xf32>
    %94 = vector.extract_strided_slice %21 {offsets = [12, 0], sizes = [1, 128], strides = [1, 1]} : vector<16x128xf32> to vector<1x128xf32>
    %95 = vector.broadcast %93 : vector<8x1xf32> to vector<8x128xf32>
    %96 = vector.broadcast %94 : vector<1x128xf32> to vector<8x128xf32>
    %97 = arith.mulf %95, %96 : vector<8x128xf32>
    %98 = arith.addf %92, %97 : vector<8x128xf32>
    %99 = vector.extract_strided_slice %0 {offsets = [0, 13], sizes = [8, 1], strides = [1, 1]} : vector<8x16xf32> to vector<8x1xf32>
    %100 = vector.extract_strided_slice %21 {offsets = [13, 0], sizes = [1, 128], strides = [1, 1]} : vector<16x128xf32> to vector<1x128xf32>
    %101 = vector.broadcast %99 : vector<8x1xf32> to vector<8x128xf32>
    %102 = vector.broadcast %100 : vector<1x128xf32> to vector<8x128xf32>
    %103 = arith.mulf %101, %102 : vector<8x128xf32>
    %104 = arith.addf %98, %103 : vector<8x128xf32>
    %105 = vector.extract_strided_slice %0 {offsets = [0, 14], sizes = [8, 1], strides = [1, 1]} : vector<8x16xf32> to vector<8x1xf32>
    %106 = vector.extract_strided_slice %21 {offsets = [14, 0], sizes = [1, 128], strides = [1, 1]} : vector<16x128xf32> to vector<1x128xf32>
    %107 = vector.broadcast %105 : vector<8x1xf32> to vector<8x128xf32>
    %108 = vector.broadcast %106 : vector<1x128xf32> to vector<8x128xf32>
    %109 = arith.mulf %107, %108 : vector<8x128xf32>
    %110 = arith.addf %104, %109 : vector<8x128xf32>
    %111 = vector.extract_strided_slice %0 {offsets = [0, 15], sizes = [8, 1], strides = [1, 1]} : vector<8x16xf32> to vector<8x1xf32>
    %112 = vector.extract_strided_slice %21 {offsets = [15, 0], sizes = [1, 128], strides = [1, 1]} : vector<16x128xf32> to vector<1x128xf32>
    %113 = vector.broadcast %111 : vector<8x1xf32> to vector<8x128xf32>
    %114 = vector.broadcast %112 : vector<1x128xf32> to vector<8x128xf32>
    %115 = arith.mulf %113, %114 : vector<8x128xf32>
    %116 = arith.addf %110, %115 : vector<8x128xf32>
    %117 = vector.broadcast %1 : vector<8x1xf32> to vector<8x128xf32>
    %118 = arith.addf %116, %117 : vector<8x128xf32>
    %cst = arith.constant 0.000000e+00 : f32
    %119 = vector.broadcast %cst : f32 to vector<8x128xf32>
    %120 = arith.maximumf %118, %119 : vector<8x128xf32>
    %121 = vector.extract_strided_slice %2 {offsets = [0, 0], sizes = [8, 1], strides = [1, 1]} : vector<8x8xf32> to vector<8x1xf32>
    %122 = vector.extract_strided_slice %120 {offsets = [0, 0], sizes = [1, 128], strides = [1, 1]} : vector<8x128xf32> to vector<1x128xf32>
    %123 = vector.broadcast %121 : vector<8x1xf32> to vector<8x128xf32>
    %124 = vector.broadcast %122 : vector<1x128xf32> to vector<8x128xf32>
    %125 = arith.mulf %123, %124 : vector<8x128xf32>
    %126 = vector.extract_strided_slice %2 {offsets = [0, 1], sizes = [8, 1], strides = [1, 1]} : vector<8x8xf32> to vector<8x1xf32>
    %127 = vector.extract_strided_slice %120 {offsets = [1, 0], sizes = [1, 128], strides = [1, 1]} : vector<8x128xf32> to vector<1x128xf32>
    %128 = vector.broadcast %126 : vector<8x1xf32> to vector<8x128xf32>
    %129 = vector.broadcast %127 : vector<1x128xf32> to vector<8x128xf32>
    %130 = arith.mulf %128, %129 : vector<8x128xf32>
    %131 = arith.addf %125, %130 : vector<8x128xf32>
    %132 = vector.extract_strided_slice %2 {offsets = [0, 2], sizes = [8, 1], strides = [1, 1]} : vector<8x8xf32> to vector<8x1xf32>
    %133 = vector.extract_strided_slice %120 {offsets = [2, 0], sizes = [1, 128], strides = [1, 1]} : vector<8x128xf32> to vector<1x128xf32>
    %134 = vector.broadcast %132 : vector<8x1xf32> to vector<8x128xf32>
    %135 = vector.broadcast %133 : vector<1x128xf32> to vector<8x128xf32>
    %136 = arith.mulf %134, %135 : vector<8x128xf32>
    %137 = arith.addf %131, %136 : vector<8x128xf32>
    %138 = vector.extract_strided_slice %2 {offsets = [0, 3], sizes = [8, 1], strides = [1, 1]} : vector<8x8xf32> to vector<8x1xf32>
    %139 = vector.extract_strided_slice %120 {offsets = [3, 0], sizes = [1, 128], strides = [1, 1]} : vector<8x128xf32> to vector<1x128xf32>
    %140 = vector.broadcast %138 : vector<8x1xf32> to vector<8x128xf32>
    %141 = vector.broadcast %139 : vector<1x128xf32> to vector<8x128xf32>
    %142 = arith.mulf %140, %141 : vector<8x128xf32>
    %143 = arith.addf %137, %142 : vector<8x128xf32>
    %144 = vector.extract_strided_slice %2 {offsets = [0, 4], sizes = [8, 1], strides = [1, 1]} : vector<8x8xf32> to vector<8x1xf32>
    %145 = vector.extract_strided_slice %120 {offsets = [4, 0], sizes = [1, 128], strides = [1, 1]} : vector<8x128xf32> to vector<1x128xf32>
    %146 = vector.broadcast %144 : vector<8x1xf32> to vector<8x128xf32>
    %147 = vector.broadcast %145 : vector<1x128xf32> to vector<8x128xf32>
    %148 = arith.mulf %146, %147 : vector<8x128xf32>
    %149 = arith.addf %143, %148 : vector<8x128xf32>
    %150 = vector.extract_strided_slice %2 {offsets = [0, 5], sizes = [8, 1], strides = [1, 1]} : vector<8x8xf32> to vector<8x1xf32>
    %151 = vector.extract_strided_slice %120 {offsets = [5, 0], sizes = [1, 128], strides = [1, 1]} : vector<8x128xf32> to vector<1x128xf32>
    %152 = vector.broadcast %150 : vector<8x1xf32> to vector<8x128xf32>
    %153 = vector.broadcast %151 : vector<1x128xf32> to vector<8x128xf32>
    %154 = arith.mulf %152, %153 : vector<8x128xf32>
    %155 = arith.addf %149, %154 : vector<8x128xf32>
    %156 = vector.extract_strided_slice %2 {offsets = [0, 6], sizes = [8, 1], strides = [1, 1]} : vector<8x8xf32> to vector<8x1xf32>
    %157 = vector.extract_strided_slice %120 {offsets = [6, 0], sizes = [1, 128], strides = [1, 1]} : vector<8x128xf32> to vector<1x128xf32>
    %158 = vector.broadcast %156 : vector<8x1xf32> to vector<8x128xf32>
    %159 = vector.broadcast %157 : vector<1x128xf32> to vector<8x128xf32>
    %160 = arith.mulf %158, %159 : vector<8x128xf32>
    %161 = arith.addf %155, %160 : vector<8x128xf32>
    %162 = vector.extract_strided_slice %2 {offsets = [0, 7], sizes = [8, 1], strides = [1, 1]} : vector<8x8xf32> to vector<8x1xf32>
    %163 = vector.extract_strided_slice %120 {offsets = [7, 0], sizes = [1, 128], strides = [1, 1]} : vector<8x128xf32> to vector<1x128xf32>
    %164 = vector.broadcast %162 : vector<8x1xf32> to vector<8x128xf32>
    %165 = vector.broadcast %163 : vector<1x128xf32> to vector<8x128xf32>
    %166 = arith.mulf %164, %165 : vector<8x128xf32>
    %167 = arith.addf %161, %166 : vector<8x128xf32>
    %168 = vector.broadcast %3 : vector<8x1xf32> to vector<8x128xf32>
    %169 = arith.addf %167, %168 : vector<8x128xf32>
    %cst_19 = arith.constant 0.000000e+00 : f32
    %170 = vector.broadcast %cst_19 : f32 to vector<8x128xf32>
    %171 = arith.maximumf %169, %170 : vector<8x128xf32>
    %172 = vector.extract_strided_slice %4 {offsets = [0, 0], sizes = [8, 1], strides = [1, 1]} : vector<8x8xf32> to vector<8x1xf32>
    %173 = vector.extract_strided_slice %171 {offsets = [0, 0], sizes = [1, 128], strides = [1, 1]} : vector<8x128xf32> to vector<1x128xf32>
    %174 = vector.broadcast %172 : vector<8x1xf32> to vector<8x128xf32>
    %175 = vector.broadcast %173 : vector<1x128xf32> to vector<8x128xf32>
    %176 = arith.mulf %174, %175 : vector<8x128xf32>
    %177 = vector.extract_strided_slice %4 {offsets = [0, 1], sizes = [8, 1], strides = [1, 1]} : vector<8x8xf32> to vector<8x1xf32>
    %178 = vector.extract_strided_slice %171 {offsets = [1, 0], sizes = [1, 128], strides = [1, 1]} : vector<8x128xf32> to vector<1x128xf32>
    %179 = vector.broadcast %177 : vector<8x1xf32> to vector<8x128xf32>
    %180 = vector.broadcast %178 : vector<1x128xf32> to vector<8x128xf32>
    %181 = arith.mulf %179, %180 : vector<8x128xf32>
    %182 = arith.addf %176, %181 : vector<8x128xf32>
    %183 = vector.extract_strided_slice %4 {offsets = [0, 2], sizes = [8, 1], strides = [1, 1]} : vector<8x8xf32> to vector<8x1xf32>
    %184 = vector.extract_strided_slice %171 {offsets = [2, 0], sizes = [1, 128], strides = [1, 1]} : vector<8x128xf32> to vector<1x128xf32>
    %185 = vector.broadcast %183 : vector<8x1xf32> to vector<8x128xf32>
    %186 = vector.broadcast %184 : vector<1x128xf32> to vector<8x128xf32>
    %187 = arith.mulf %185, %186 : vector<8x128xf32>
    %188 = arith.addf %182, %187 : vector<8x128xf32>
    %189 = vector.extract_strided_slice %4 {offsets = [0, 3], sizes = [8, 1], strides = [1, 1]} : vector<8x8xf32> to vector<8x1xf32>
    %190 = vector.extract_strided_slice %171 {offsets = [3, 0], sizes = [1, 128], strides = [1, 1]} : vector<8x128xf32> to vector<1x128xf32>
    %191 = vector.broadcast %189 : vector<8x1xf32> to vector<8x128xf32>
    %192 = vector.broadcast %190 : vector<1x128xf32> to vector<8x128xf32>
    %193 = arith.mulf %191, %192 : vector<8x128xf32>
    %194 = arith.addf %188, %193 : vector<8x128xf32>
    %195 = vector.extract_strided_slice %4 {offsets = [0, 4], sizes = [8, 1], strides = [1, 1]} : vector<8x8xf32> to vector<8x1xf32>
    %196 = vector.extract_strided_slice %171 {offsets = [4, 0], sizes = [1, 128], strides = [1, 1]} : vector<8x128xf32> to vector<1x128xf32>
    %197 = vector.broadcast %195 : vector<8x1xf32> to vector<8x128xf32>
    %198 = vector.broadcast %196 : vector<1x128xf32> to vector<8x128xf32>
    %199 = arith.mulf %197, %198 : vector<8x128xf32>
    %200 = arith.addf %194, %199 : vector<8x128xf32>
    %201 = vector.extract_strided_slice %4 {offsets = [0, 5], sizes = [8, 1], strides = [1, 1]} : vector<8x8xf32> to vector<8x1xf32>
    %202 = vector.extract_strided_slice %171 {offsets = [5, 0], sizes = [1, 128], strides = [1, 1]} : vector<8x128xf32> to vector<1x128xf32>
    %203 = vector.broadcast %201 : vector<8x1xf32> to vector<8x128xf32>
    %204 = vector.broadcast %202 : vector<1x128xf32> to vector<8x128xf32>
    %205 = arith.mulf %203, %204 : vector<8x128xf32>
    %206 = arith.addf %200, %205 : vector<8x128xf32>
    %207 = vector.extract_strided_slice %4 {offsets = [0, 6], sizes = [8, 1], strides = [1, 1]} : vector<8x8xf32> to vector<8x1xf32>
    %208 = vector.extract_strided_slice %171 {offsets = [6, 0], sizes = [1, 128], strides = [1, 1]} : vector<8x128xf32> to vector<1x128xf32>
    %209 = vector.broadcast %207 : vector<8x1xf32> to vector<8x128xf32>
    %210 = vector.broadcast %208 : vector<1x128xf32> to vector<8x128xf32>
    %211 = arith.mulf %209, %210 : vector<8x128xf32>
    %212 = arith.addf %206, %211 : vector<8x128xf32>
    %213 = vector.extract_strided_slice %4 {offsets = [0, 7], sizes = [8, 1], strides = [1, 1]} : vector<8x8xf32> to vector<8x1xf32>
    %214 = vector.extract_strided_slice %171 {offsets = [7, 0], sizes = [1, 128], strides = [1, 1]} : vector<8x128xf32> to vector<1x128xf32>
    %215 = vector.broadcast %213 : vector<8x1xf32> to vector<8x128xf32>
    %216 = vector.broadcast %214 : vector<1x128xf32> to vector<8x128xf32>
    %217 = arith.mulf %215, %216 : vector<8x128xf32>
    %218 = arith.addf %212, %217 : vector<8x128xf32>
    %219 = vector.broadcast %5 : vector<8x1xf32> to vector<8x128xf32>
    %220 = arith.addf %218, %219 : vector<8x128xf32>
    %cst_20 = arith.constant 0.000000e+00 : f32
    %221 = vector.broadcast %cst_20 : f32 to vector<8x128xf32>
    %222 = arith.maximumf %220, %221 : vector<8x128xf32>
    %223 = vector.extract_strided_slice %6 {offsets = [0, 0], sizes = [8, 1], strides = [1, 1]} : vector<8x8xf32> to vector<8x1xf32>
    %224 = vector.extract_strided_slice %222 {offsets = [0, 0], sizes = [1, 128], strides = [1, 1]} : vector<8x128xf32> to vector<1x128xf32>
    %225 = vector.broadcast %223 : vector<8x1xf32> to vector<8x128xf32>
    %226 = vector.broadcast %224 : vector<1x128xf32> to vector<8x128xf32>
    %227 = arith.mulf %225, %226 : vector<8x128xf32>
    %228 = vector.extract_strided_slice %6 {offsets = [0, 1], sizes = [8, 1], strides = [1, 1]} : vector<8x8xf32> to vector<8x1xf32>
    %229 = vector.extract_strided_slice %222 {offsets = [1, 0], sizes = [1, 128], strides = [1, 1]} : vector<8x128xf32> to vector<1x128xf32>
    %230 = vector.broadcast %228 : vector<8x1xf32> to vector<8x128xf32>
    %231 = vector.broadcast %229 : vector<1x128xf32> to vector<8x128xf32>
    %232 = arith.mulf %230, %231 : vector<8x128xf32>
    %233 = arith.addf %227, %232 : vector<8x128xf32>
    %234 = vector.extract_strided_slice %6 {offsets = [0, 2], sizes = [8, 1], strides = [1, 1]} : vector<8x8xf32> to vector<8x1xf32>
    %235 = vector.extract_strided_slice %222 {offsets = [2, 0], sizes = [1, 128], strides = [1, 1]} : vector<8x128xf32> to vector<1x128xf32>
    %236 = vector.broadcast %234 : vector<8x1xf32> to vector<8x128xf32>
    %237 = vector.broadcast %235 : vector<1x128xf32> to vector<8x128xf32>
    %238 = arith.mulf %236, %237 : vector<8x128xf32>
    %239 = arith.addf %233, %238 : vector<8x128xf32>
    %240 = vector.extract_strided_slice %6 {offsets = [0, 3], sizes = [8, 1], strides = [1, 1]} : vector<8x8xf32> to vector<8x1xf32>
    %241 = vector.extract_strided_slice %222 {offsets = [3, 0], sizes = [1, 128], strides = [1, 1]} : vector<8x128xf32> to vector<1x128xf32>
    %242 = vector.broadcast %240 : vector<8x1xf32> to vector<8x128xf32>
    %243 = vector.broadcast %241 : vector<1x128xf32> to vector<8x128xf32>
    %244 = arith.mulf %242, %243 : vector<8x128xf32>
    %245 = arith.addf %239, %244 : vector<8x128xf32>
    %246 = vector.extract_strided_slice %6 {offsets = [0, 4], sizes = [8, 1], strides = [1, 1]} : vector<8x8xf32> to vector<8x1xf32>
    %247 = vector.extract_strided_slice %222 {offsets = [4, 0], sizes = [1, 128], strides = [1, 1]} : vector<8x128xf32> to vector<1x128xf32>
    %248 = vector.broadcast %246 : vector<8x1xf32> to vector<8x128xf32>
    %249 = vector.broadcast %247 : vector<1x128xf32> to vector<8x128xf32>
    %250 = arith.mulf %248, %249 : vector<8x128xf32>
    %251 = arith.addf %245, %250 : vector<8x128xf32>
    %252 = vector.extract_strided_slice %6 {offsets = [0, 5], sizes = [8, 1], strides = [1, 1]} : vector<8x8xf32> to vector<8x1xf32>
    %253 = vector.extract_strided_slice %222 {offsets = [5, 0], sizes = [1, 128], strides = [1, 1]} : vector<8x128xf32> to vector<1x128xf32>
    %254 = vector.broadcast %252 : vector<8x1xf32> to vector<8x128xf32>
    %255 = vector.broadcast %253 : vector<1x128xf32> to vector<8x128xf32>
    %256 = arith.mulf %254, %255 : vector<8x128xf32>
    %257 = arith.addf %251, %256 : vector<8x128xf32>
    %258 = vector.extract_strided_slice %6 {offsets = [0, 6], sizes = [8, 1], strides = [1, 1]} : vector<8x8xf32> to vector<8x1xf32>
    %259 = vector.extract_strided_slice %222 {offsets = [6, 0], sizes = [1, 128], strides = [1, 1]} : vector<8x128xf32> to vector<1x128xf32>
    %260 = vector.broadcast %258 : vector<8x1xf32> to vector<8x128xf32>
    %261 = vector.broadcast %259 : vector<1x128xf32> to vector<8x128xf32>
    %262 = arith.mulf %260, %261 : vector<8x128xf32>
    %263 = arith.addf %257, %262 : vector<8x128xf32>
    %264 = vector.extract_strided_slice %6 {offsets = [0, 7], sizes = [8, 1], strides = [1, 1]} : vector<8x8xf32> to vector<8x1xf32>
    %265 = vector.extract_strided_slice %222 {offsets = [7, 0], sizes = [1, 128], strides = [1, 1]} : vector<8x128xf32> to vector<1x128xf32>
    %266 = vector.broadcast %264 : vector<8x1xf32> to vector<8x128xf32>
    %267 = vector.broadcast %265 : vector<1x128xf32> to vector<8x128xf32>
    %268 = arith.mulf %266, %267 : vector<8x128xf32>
    %269 = arith.addf %263, %268 : vector<8x128xf32>
    %270 = vector.broadcast %7 : vector<8x1xf32> to vector<8x128xf32>
    %271 = arith.addf %269, %270 : vector<8x128xf32>
    %cst_21 = arith.constant 0.000000e+00 : f32
    %272 = vector.broadcast %cst_21 : f32 to vector<8x128xf32>
    %273 = arith.maximumf %271, %272 : vector<8x128xf32>
    %274 = vector.extract_strided_slice %8 {offsets = [0, 0], sizes = [8, 1], strides = [1, 1]} : vector<8x8xf32> to vector<8x1xf32>
    %275 = vector.extract_strided_slice %273 {offsets = [0, 0], sizes = [1, 128], strides = [1, 1]} : vector<8x128xf32> to vector<1x128xf32>
    %276 = vector.broadcast %274 : vector<8x1xf32> to vector<8x128xf32>
    %277 = vector.broadcast %275 : vector<1x128xf32> to vector<8x128xf32>
    %278 = arith.mulf %276, %277 : vector<8x128xf32>
    %279 = vector.extract_strided_slice %8 {offsets = [0, 1], sizes = [8, 1], strides = [1, 1]} : vector<8x8xf32> to vector<8x1xf32>
    %280 = vector.extract_strided_slice %273 {offsets = [1, 0], sizes = [1, 128], strides = [1, 1]} : vector<8x128xf32> to vector<1x128xf32>
    %281 = vector.broadcast %279 : vector<8x1xf32> to vector<8x128xf32>
    %282 = vector.broadcast %280 : vector<1x128xf32> to vector<8x128xf32>
    %283 = arith.mulf %281, %282 : vector<8x128xf32>
    %284 = arith.addf %278, %283 : vector<8x128xf32>
    %285 = vector.extract_strided_slice %8 {offsets = [0, 2], sizes = [8, 1], strides = [1, 1]} : vector<8x8xf32> to vector<8x1xf32>
    %286 = vector.extract_strided_slice %273 {offsets = [2, 0], sizes = [1, 128], strides = [1, 1]} : vector<8x128xf32> to vector<1x128xf32>
    %287 = vector.broadcast %285 : vector<8x1xf32> to vector<8x128xf32>
    %288 = vector.broadcast %286 : vector<1x128xf32> to vector<8x128xf32>
    %289 = arith.mulf %287, %288 : vector<8x128xf32>
    %290 = arith.addf %284, %289 : vector<8x128xf32>
    %291 = vector.extract_strided_slice %8 {offsets = [0, 3], sizes = [8, 1], strides = [1, 1]} : vector<8x8xf32> to vector<8x1xf32>
    %292 = vector.extract_strided_slice %273 {offsets = [3, 0], sizes = [1, 128], strides = [1, 1]} : vector<8x128xf32> to vector<1x128xf32>
    %293 = vector.broadcast %291 : vector<8x1xf32> to vector<8x128xf32>
    %294 = vector.broadcast %292 : vector<1x128xf32> to vector<8x128xf32>
    %295 = arith.mulf %293, %294 : vector<8x128xf32>
    %296 = arith.addf %290, %295 : vector<8x128xf32>
    %297 = vector.extract_strided_slice %8 {offsets = [0, 4], sizes = [8, 1], strides = [1, 1]} : vector<8x8xf32> to vector<8x1xf32>
    %298 = vector.extract_strided_slice %273 {offsets = [4, 0], sizes = [1, 128], strides = [1, 1]} : vector<8x128xf32> to vector<1x128xf32>
    %299 = vector.broadcast %297 : vector<8x1xf32> to vector<8x128xf32>
    %300 = vector.broadcast %298 : vector<1x128xf32> to vector<8x128xf32>
    %301 = arith.mulf %299, %300 : vector<8x128xf32>
    %302 = arith.addf %296, %301 : vector<8x128xf32>
    %303 = vector.extract_strided_slice %8 {offsets = [0, 5], sizes = [8, 1], strides = [1, 1]} : vector<8x8xf32> to vector<8x1xf32>
    %304 = vector.extract_strided_slice %273 {offsets = [5, 0], sizes = [1, 128], strides = [1, 1]} : vector<8x128xf32> to vector<1x128xf32>
    %305 = vector.broadcast %303 : vector<8x1xf32> to vector<8x128xf32>
    %306 = vector.broadcast %304 : vector<1x128xf32> to vector<8x128xf32>
    %307 = arith.mulf %305, %306 : vector<8x128xf32>
    %308 = arith.addf %302, %307 : vector<8x128xf32>
    %309 = vector.extract_strided_slice %8 {offsets = [0, 6], sizes = [8, 1], strides = [1, 1]} : vector<8x8xf32> to vector<8x1xf32>
    %310 = vector.extract_strided_slice %273 {offsets = [6, 0], sizes = [1, 128], strides = [1, 1]} : vector<8x128xf32> to vector<1x128xf32>
    %311 = vector.broadcast %309 : vector<8x1xf32> to vector<8x128xf32>
    %312 = vector.broadcast %310 : vector<1x128xf32> to vector<8x128xf32>
    %313 = arith.mulf %311, %312 : vector<8x128xf32>
    %314 = arith.addf %308, %313 : vector<8x128xf32>
    %315 = vector.extract_strided_slice %8 {offsets = [0, 7], sizes = [8, 1], strides = [1, 1]} : vector<8x8xf32> to vector<8x1xf32>
    %316 = vector.extract_strided_slice %273 {offsets = [7, 0], sizes = [1, 128], strides = [1, 1]} : vector<8x128xf32> to vector<1x128xf32>
    %317 = vector.broadcast %315 : vector<8x1xf32> to vector<8x128xf32>
    %318 = vector.broadcast %316 : vector<1x128xf32> to vector<8x128xf32>
    %319 = arith.mulf %317, %318 : vector<8x128xf32>
    %320 = arith.addf %314, %319 : vector<8x128xf32>
    %321 = vector.broadcast %9 : vector<8x1xf32> to vector<8x128xf32>
    %322 = arith.addf %320, %321 : vector<8x128xf32>
    %cst_22 = arith.constant 0.000000e+00 : f32
    %323 = vector.broadcast %cst_22 : f32 to vector<8x128xf32>
    %324 = arith.maximumf %322, %323 : vector<8x128xf32>
    %325 = vector.extract_strided_slice %10 {offsets = [0, 0], sizes = [8, 1], strides = [1, 1]} : vector<8x8xf32> to vector<8x1xf32>
    %326 = vector.extract_strided_slice %324 {offsets = [0, 0], sizes = [1, 128], strides = [1, 1]} : vector<8x128xf32> to vector<1x128xf32>
    %327 = vector.broadcast %325 : vector<8x1xf32> to vector<8x128xf32>
    %328 = vector.broadcast %326 : vector<1x128xf32> to vector<8x128xf32>
    %329 = arith.mulf %327, %328 : vector<8x128xf32>
    %330 = vector.extract_strided_slice %10 {offsets = [0, 1], sizes = [8, 1], strides = [1, 1]} : vector<8x8xf32> to vector<8x1xf32>
    %331 = vector.extract_strided_slice %324 {offsets = [1, 0], sizes = [1, 128], strides = [1, 1]} : vector<8x128xf32> to vector<1x128xf32>
    %332 = vector.broadcast %330 : vector<8x1xf32> to vector<8x128xf32>
    %333 = vector.broadcast %331 : vector<1x128xf32> to vector<8x128xf32>
    %334 = arith.mulf %332, %333 : vector<8x128xf32>
    %335 = arith.addf %329, %334 : vector<8x128xf32>
    %336 = vector.extract_strided_slice %10 {offsets = [0, 2], sizes = [8, 1], strides = [1, 1]} : vector<8x8xf32> to vector<8x1xf32>
    %337 = vector.extract_strided_slice %324 {offsets = [2, 0], sizes = [1, 128], strides = [1, 1]} : vector<8x128xf32> to vector<1x128xf32>
    %338 = vector.broadcast %336 : vector<8x1xf32> to vector<8x128xf32>
    %339 = vector.broadcast %337 : vector<1x128xf32> to vector<8x128xf32>
    %340 = arith.mulf %338, %339 : vector<8x128xf32>
    %341 = arith.addf %335, %340 : vector<8x128xf32>
    %342 = vector.extract_strided_slice %10 {offsets = [0, 3], sizes = [8, 1], strides = [1, 1]} : vector<8x8xf32> to vector<8x1xf32>
    %343 = vector.extract_strided_slice %324 {offsets = [3, 0], sizes = [1, 128], strides = [1, 1]} : vector<8x128xf32> to vector<1x128xf32>
    %344 = vector.broadcast %342 : vector<8x1xf32> to vector<8x128xf32>
    %345 = vector.broadcast %343 : vector<1x128xf32> to vector<8x128xf32>
    %346 = arith.mulf %344, %345 : vector<8x128xf32>
    %347 = arith.addf %341, %346 : vector<8x128xf32>
    %348 = vector.extract_strided_slice %10 {offsets = [0, 4], sizes = [8, 1], strides = [1, 1]} : vector<8x8xf32> to vector<8x1xf32>
    %349 = vector.extract_strided_slice %324 {offsets = [4, 0], sizes = [1, 128], strides = [1, 1]} : vector<8x128xf32> to vector<1x128xf32>
    %350 = vector.broadcast %348 : vector<8x1xf32> to vector<8x128xf32>
    %351 = vector.broadcast %349 : vector<1x128xf32> to vector<8x128xf32>
    %352 = arith.mulf %350, %351 : vector<8x128xf32>
    %353 = arith.addf %347, %352 : vector<8x128xf32>
    %354 = vector.extract_strided_slice %10 {offsets = [0, 5], sizes = [8, 1], strides = [1, 1]} : vector<8x8xf32> to vector<8x1xf32>
    %355 = vector.extract_strided_slice %324 {offsets = [5, 0], sizes = [1, 128], strides = [1, 1]} : vector<8x128xf32> to vector<1x128xf32>
    %356 = vector.broadcast %354 : vector<8x1xf32> to vector<8x128xf32>
    %357 = vector.broadcast %355 : vector<1x128xf32> to vector<8x128xf32>
    %358 = arith.mulf %356, %357 : vector<8x128xf32>
    %359 = arith.addf %353, %358 : vector<8x128xf32>
    %360 = vector.extract_strided_slice %10 {offsets = [0, 6], sizes = [8, 1], strides = [1, 1]} : vector<8x8xf32> to vector<8x1xf32>
    %361 = vector.extract_strided_slice %324 {offsets = [6, 0], sizes = [1, 128], strides = [1, 1]} : vector<8x128xf32> to vector<1x128xf32>
    %362 = vector.broadcast %360 : vector<8x1xf32> to vector<8x128xf32>
    %363 = vector.broadcast %361 : vector<1x128xf32> to vector<8x128xf32>
    %364 = arith.mulf %362, %363 : vector<8x128xf32>
    %365 = arith.addf %359, %364 : vector<8x128xf32>
    %366 = vector.extract_strided_slice %10 {offsets = [0, 7], sizes = [8, 1], strides = [1, 1]} : vector<8x8xf32> to vector<8x1xf32>
    %367 = vector.extract_strided_slice %324 {offsets = [7, 0], sizes = [1, 128], strides = [1, 1]} : vector<8x128xf32> to vector<1x128xf32>
    %368 = vector.broadcast %366 : vector<8x1xf32> to vector<8x128xf32>
    %369 = vector.broadcast %367 : vector<1x128xf32> to vector<8x128xf32>
    %370 = arith.mulf %368, %369 : vector<8x128xf32>
    %371 = arith.addf %365, %370 : vector<8x128xf32>
    %372 = vector.broadcast %11 : vector<8x1xf32> to vector<8x128xf32>
    %373 = arith.addf %371, %372 : vector<8x128xf32>
    %cst_23 = arith.constant 0.000000e+00 : f32
    %374 = vector.broadcast %cst_23 : f32 to vector<8x128xf32>
    %375 = arith.maximumf %373, %374 : vector<8x128xf32>
    %376 = vector.extract_strided_slice %12 {offsets = [0, 0], sizes = [8, 1], strides = [1, 1]} : vector<8x8xf32> to vector<8x1xf32>
    %377 = vector.extract_strided_slice %375 {offsets = [0, 0], sizes = [1, 128], strides = [1, 1]} : vector<8x128xf32> to vector<1x128xf32>
    %378 = vector.broadcast %376 : vector<8x1xf32> to vector<8x128xf32>
    %379 = vector.broadcast %377 : vector<1x128xf32> to vector<8x128xf32>
    %380 = arith.mulf %378, %379 : vector<8x128xf32>
    %381 = vector.extract_strided_slice %12 {offsets = [0, 1], sizes = [8, 1], strides = [1, 1]} : vector<8x8xf32> to vector<8x1xf32>
    %382 = vector.extract_strided_slice %375 {offsets = [1, 0], sizes = [1, 128], strides = [1, 1]} : vector<8x128xf32> to vector<1x128xf32>
    %383 = vector.broadcast %381 : vector<8x1xf32> to vector<8x128xf32>
    %384 = vector.broadcast %382 : vector<1x128xf32> to vector<8x128xf32>
    %385 = arith.mulf %383, %384 : vector<8x128xf32>
    %386 = arith.addf %380, %385 : vector<8x128xf32>
    %387 = vector.extract_strided_slice %12 {offsets = [0, 2], sizes = [8, 1], strides = [1, 1]} : vector<8x8xf32> to vector<8x1xf32>
    %388 = vector.extract_strided_slice %375 {offsets = [2, 0], sizes = [1, 128], strides = [1, 1]} : vector<8x128xf32> to vector<1x128xf32>
    %389 = vector.broadcast %387 : vector<8x1xf32> to vector<8x128xf32>
    %390 = vector.broadcast %388 : vector<1x128xf32> to vector<8x128xf32>
    %391 = arith.mulf %389, %390 : vector<8x128xf32>
    %392 = arith.addf %386, %391 : vector<8x128xf32>
    %393 = vector.extract_strided_slice %12 {offsets = [0, 3], sizes = [8, 1], strides = [1, 1]} : vector<8x8xf32> to vector<8x1xf32>
    %394 = vector.extract_strided_slice %375 {offsets = [3, 0], sizes = [1, 128], strides = [1, 1]} : vector<8x128xf32> to vector<1x128xf32>
    %395 = vector.broadcast %393 : vector<8x1xf32> to vector<8x128xf32>
    %396 = vector.broadcast %394 : vector<1x128xf32> to vector<8x128xf32>
    %397 = arith.mulf %395, %396 : vector<8x128xf32>
    %398 = arith.addf %392, %397 : vector<8x128xf32>
    %399 = vector.extract_strided_slice %12 {offsets = [0, 4], sizes = [8, 1], strides = [1, 1]} : vector<8x8xf32> to vector<8x1xf32>
    %400 = vector.extract_strided_slice %375 {offsets = [4, 0], sizes = [1, 128], strides = [1, 1]} : vector<8x128xf32> to vector<1x128xf32>
    %401 = vector.broadcast %399 : vector<8x1xf32> to vector<8x128xf32>
    %402 = vector.broadcast %400 : vector<1x128xf32> to vector<8x128xf32>
    %403 = arith.mulf %401, %402 : vector<8x128xf32>
    %404 = arith.addf %398, %403 : vector<8x128xf32>
    %405 = vector.extract_strided_slice %12 {offsets = [0, 5], sizes = [8, 1], strides = [1, 1]} : vector<8x8xf32> to vector<8x1xf32>
    %406 = vector.extract_strided_slice %375 {offsets = [5, 0], sizes = [1, 128], strides = [1, 1]} : vector<8x128xf32> to vector<1x128xf32>
    %407 = vector.broadcast %405 : vector<8x1xf32> to vector<8x128xf32>
    %408 = vector.broadcast %406 : vector<1x128xf32> to vector<8x128xf32>
    %409 = arith.mulf %407, %408 : vector<8x128xf32>
    %410 = arith.addf %404, %409 : vector<8x128xf32>
    %411 = vector.extract_strided_slice %12 {offsets = [0, 6], sizes = [8, 1], strides = [1, 1]} : vector<8x8xf32> to vector<8x1xf32>
    %412 = vector.extract_strided_slice %375 {offsets = [6, 0], sizes = [1, 128], strides = [1, 1]} : vector<8x128xf32> to vector<1x128xf32>
    %413 = vector.broadcast %411 : vector<8x1xf32> to vector<8x128xf32>
    %414 = vector.broadcast %412 : vector<1x128xf32> to vector<8x128xf32>
    %415 = arith.mulf %413, %414 : vector<8x128xf32>
    %416 = arith.addf %410, %415 : vector<8x128xf32>
    %417 = vector.extract_strided_slice %12 {offsets = [0, 7], sizes = [8, 1], strides = [1, 1]} : vector<8x8xf32> to vector<8x1xf32>
    %418 = vector.extract_strided_slice %375 {offsets = [7, 0], sizes = [1, 128], strides = [1, 1]} : vector<8x128xf32> to vector<1x128xf32>
    %419 = vector.broadcast %417 : vector<8x1xf32> to vector<8x128xf32>
    %420 = vector.broadcast %418 : vector<1x128xf32> to vector<8x128xf32>
    %421 = arith.mulf %419, %420 : vector<8x128xf32>
    %422 = arith.addf %416, %421 : vector<8x128xf32>
    %423 = vector.broadcast %13 : vector<8x1xf32> to vector<8x128xf32>
    %424 = arith.addf %422, %423 : vector<8x128xf32>
    %cst_24 = arith.constant 0.000000e+00 : f32
    %425 = vector.broadcast %cst_24 : f32 to vector<8x128xf32>
    %426 = arith.maximumf %424, %425 : vector<8x128xf32>
    %427 = vector.broadcast %14 : vector<8x1xf32> to vector<8x128xf32>
    %428 = arith.mulf %426, %427 : vector<8x128xf32>
    %cst_25 = arith.constant dense<0.000000e+00> : vector<128xf32>
    %429 = vector.multi_reduction <add>, %428, %cst_25 [0] : vector<8x128xf32> to vector<128xf32>
    %430 = vector.shape_cast %429 : vector<128xf32> to vector<1x128xf32>
    %431 = vector.broadcast %15 : vector<1x1xf32> to vector<1x128xf32>
    %432 = arith.addf %430, %431 : vector<1x128xf32>
    %433 = math.absf %432 : vector<1x128xf32>
    %cst_26 = arith.constant 0.000000e+00 : f32
    %434 = vector.broadcast %cst_26 : f32 to vector<1x128xf32>
    %435 = arith.subf %434, %433 : vector<1x128xf32>
    %436 = math.exp %435 : vector<1x128xf32>
    %cst_27 = arith.constant 0.000000e+00 : f32
    %437 = vector.broadcast %cst_27 : f32 to vector<1x128xf32>
    %438 = arith.cmpf oge, %432, %437 : vector<1x128xf32>
    %cst_28 = arith.constant 1.000000e+00 : f32
    %439 = vector.broadcast %cst_28 : f32 to vector<1x128xf32>
    %440 = arith.select %438, %439, %436 : vector<1x128xi1>, vector<1x128xf32>
    %cst_29 = arith.constant 1.000000e+00 : f32
    %441 = vector.broadcast %cst_29 : f32 to vector<1x128xf32>
    %442 = arith.addf %441, %436 : vector<1x128xf32>
    %443 = tpu.reciprocal %442 : vector<1x128xf32> -> vector<1x128xf32>
    %444 = arith.mulf %440, %443 : vector<1x128xf32>
    %c0_30 = arith.constant 0 : index
    %445 = arith.index_cast %19 : i32 to index
    %446 = vector.load %arg4[%c0_30, %445] : memref<1x128xf32, #tpu.memory_space<vmem>>, vector<1x128xf32>
    tpu.vector_store %arg4[%c0_30, %445], %444 {strides = array<i32>} : memref<1x128xf32, #tpu.memory_space<vmem>>, vector<1x128xf32>,
    %c1_i32_31 = arith.constant 1 : i32
    return
  }
  func.func @transform_0(%arg0: i32) -> (i32, i32) {
    %c0_i32 = arith.constant 0 : i32
    %c0_i32_0 = arith.constant 0 : i32
    return %c0_i32, %arg0 : i32, i32
  }
  func.func @transform_1(%arg0: i32) -> (i32, i32) {
    %c0_i32 = arith.constant 0 : i32
    %c0_i32_0 = arith.constant 0 : i32
    %c0_i32_1 = arith.constant 0 : i32
    return %c0_i32, %c0_i32_0 : i32, i32
  }
  func.func @transform_2(%arg0: i32) -> (i32, i32) {
    %c0_i32 = arith.constant 0 : i32
    %c0_i32_0 = arith.constant 0 : i32
    %c0_i32_1 = arith.constant 0 : i32
    return %c0_i32, %c0_i32_0 : i32, i32
  }
  func.func @transform_3(%arg0: i32) -> (i32, i32) {
    %c0_i32 = arith.constant 0 : i32
    %c0_i32_0 = arith.constant 0 : i32
    return %c0_i32, %arg0 : i32, i32
  }
}

</mosaic_0001>

<llo_original>
// kernel: ffnn_classification_c.1
$region0: #{ffnn_classification_c.1}
  #allocation0 [shape = 'u32[]', space=smem, size = 0x4, offset = 0x4, fixed_abs, tag = 'smem constant byte address 0x4 - core index']
  #allocation1 [shape = 'u32[144,128]{1,0:T(1,128)}', space=vmem, size = 0x12000, scoped, tag = 'internal scratch']
  %s0 = inlined_call_operand.vmem [shape: f32[16,128], index: 0, kind: input, shape index: {}]
  %s1 = inlined_call_operand.vmem [shape: f32[64,16], index: 1, kind: input, shape index: {}]
  %s2 = inlined_call_operand.vmem [shape: f32[8,8], index: 2, kind: input, shape index: {}]
  %s3 = inlined_call_operand.vmem [shape: f32[1,128], index: 3, kind: output, shape index: {}]
  %s4 = sld [smem:[#allocation0]]
  $region22: #{ffnn_classification_c.1} parent=0
    _
  %s6 = ssub.s32 1, %s4
  %s7 = scalar_select 0, %s6, %s4
  // Predicated region
  $region2: #{ffnn_classification_c.1} parent=0 // pred_check
    _
  $region3: #{ffnn_classification_c.1} parent=0 // pred_check_branch
    %9 = sbr.rel (0) target = $region5
  $region4: #{ffnn_classification_c.1} parent=0 // pred_region
    _
  $region5: #{ffnn_classification_c.1} parent=0 // pred_fallthru
    _
  // Predicated region
  $region6: #{ffnn_classification_c.1} parent=0 // pred_check
    _
  $region7: #{ffnn_classification_c.1} parent=0 // pred_check_branch
    %11 = sbr.rel (0) target = $region9
  $region8: #{ffnn_classification_c.1} parent=0 // pred_region
    _
  $region9: #{ffnn_classification_c.1} parent=0 // pred_fallthru
    _
  // Predicated region
  $region10: #{ffnn_classification_c.1} parent=0 // pred_check
    _
  $region11: #{ffnn_classification_c.1} parent=0 // pred_check_branch
    %13 = sbr.rel (0) target = $region13
  $region12: #{ffnn_classification_c.1} parent=0 // pred_region
    _
  $region13: #{ffnn_classification_c.1} parent=0 // pred_fallthru
    _
  %v14 = vld [vmem:[%s1] sm:$0xff]
  %v15 = vld [vmem:[%s2] sm:$0xff]
  %v16 = vld [vmem:[%s1 + $0x8] sm:$0xff]
  %v17 = vld [vmem:[%s1 + $0x10] sm:$0xff]
  %v18 = vld [vmem:[%s1 + $0x18] sm:$0xff]
  %v19 = vld [vmem:[%s1 + $0x20] sm:$0xff]
  %v20 = vld [vmem:[%s1 + $0x28] sm:$0xff]
  %v21 = vld [vmem:[%s1 + $0x30] sm:$0xff]
  %v22 = vld [vmem:[%s1 + $0x38] sm:$0xff]
  %v23 = vld [vmem:[%s2] sm:$0x1]
  %v24 = vld [vmem:[%s0] sm:$0xff]
  %v25 = vld [vmem:[%s0 + $0x8] sm:$0xff]
  %27 = vset.pattern.permute.xlu0 0
  %28 = vperm.xlu0 %27, %v14
  %v29 = vpop.permute.xlu0 %28
  %v31 = vlaneseq
  %v32 = vshrl.u32 %v31, 7
  %v33 = vsub.s32 0, %v32
  %v34 = vrot.slane %v24, %v33
  %v35 = vmul.f32 %v29, %v34
  %36 = vset.pattern.permute.xlu0 1
  %37 = vperm.xlu0 %36, %v14
  %v38 = vpop.permute.xlu0 %37
  %v40 = vlaneseq
  %v41 = vshrl.u32 %v40, 7
  %v42 = vsub.s32 1, %v41
  %v43 = vrot.slane %v24, %v42
  %v44 = vmul.f32 %v38, %v43
  %v45 = vadd.f32 %v35, %v44
  %46 = vset.pattern.permute.xlu0 2
  %47 = vperm.xlu0 %46, %v14
  %v48 = vpop.permute.xlu0 %47
  %v50 = vlaneseq
  %v51 = vshrl.u32 %v50, 7
  %v52 = vsub.s32 2, %v51
  %v53 = vrot.slane %v24, %v52
  %v54 = vmul.f32 %v48, %v53
  %v55 = vadd.f32 %v45, %v54
  %56 = vset.pattern.permute.xlu0 3
  %57 = vperm.xlu0 %56, %v14
  %v58 = vpop.permute.xlu0 %57
  %v60 = vlaneseq
  %v61 = vshrl.u32 %v60, 7
  %v62 = vsub.s32 3, %v61
  %v63 = vrot.slane %v24, %v62
  %v64 = vmul.f32 %v58, %v63
  %v65 = vadd.f32 %v55, %v64
  %66 = vset.pattern.permute.xlu0 4
  %67 = vperm.xlu0 %66, %v14
  %v68 = vpop.permute.xlu0 %67
  %v70 = vlaneseq
  %v71 = vshrl.u32 %v70, 7
  %v72 = vsub.s32 4, %v71
  %v73 = vrot.slane %v24, %v72
  %v74 = vmul.f32 %v68, %v73
  %v75 = vadd.f32 %v65, %v74
  %76 = vset.pattern.permute.xlu0 5
  %77 = vperm.xlu0 %76, %v14
  %v78 = vpop.permute.xlu0 %77
  %v80 = vlaneseq
  %v81 = vshrl.u32 %v80, 7
  %v82 = vsub.s32 5, %v81
  %v83 = vrot.slane %v24, %v82
  %v84 = vmul.f32 %v78, %v83
  %v85 = vadd.f32 %v75, %v84
  %86 = vset.pattern.permute.xlu0 6
  %87 = vperm.xlu0 %86, %v14
  %v88 = vpop.permute.xlu0 %87
  %v90 = vlaneseq
  %v91 = vshrl.u32 %v90, 7
  %v92 = vsub.s32 6, %v91
  %v93 = vrot.slane %v24, %v92
  %v94 = vmul.f32 %v88, %v93
  %v95 = vadd.f32 %v85, %v94
  %96 = vset.pattern.permute.xlu0 7
  %97 = vperm.xlu0 %96, %v14
  %v98 = vpop.permute.xlu0 %97
  %v100 = vlaneseq
  %v101 = vshrl.u32 %v100, 7
  %v102 = vsub.s32 7, %v101
  %v103 = vrot.slane %v24, %v102
  %v104 = vmul.f32 %v98, %v103
  %v105 = vadd.f32 %v95, %v104
  %106 = vset.pattern.permute.xlu0 8
  %107 = vperm.xlu0 %106, %v14
  %v108 = vpop.permute.xlu0 %107
  %v110 = vlaneseq
  %v111 = vshrl.u32 %v110, 7
  %v112 = vsub.s32 0, %v111
  %v113 = vrot.slane %v25, %v112
  %v114 = vmul.f32 %v108, %v113
  %v115 = vadd.f32 %v105, %v114
  %116 = vset.pattern.permute.xlu0 9
  %117 = vperm.xlu0 %116, %v14
  %v118 = vpop.permute.xlu0 %117
  %v120 = vlaneseq
  %v121 = vshrl.u32 %v120, 7
  %v122 = vsub.s32 1, %v121
  %v123 = vrot.slane %v25, %v122
  %v124 = vmul.f32 %v118, %v123
  %v125 = vadd.f32 %v115, %v124
  %126 = vset.pattern.permute.xlu0 10
  %127 = vperm.xlu0 %126, %v14
  %v128 = vpop.permute.xlu0 %127
  %v130 = vlaneseq
  %v131 = vshrl.u32 %v130, 7
  %v132 = vsub.s32 2, %v131
  %v133 = vrot.slane %v25, %v132
  %v134 = vmul.f32 %v128, %v133
  %v135 = vadd.f32 %v125, %v134
  %136 = vset.pattern.permute.xlu0 11
  %137 = vperm.xlu0 %136, %v14
  %v138 = vpop.permute.xlu0 %137
  %v140 = vlaneseq
  %v141 = vshrl.u32 %v140, 7
  %v142 = vsub.s32 3, %v141
  %v143 = vrot.slane %v25, %v142
  %v144 = vmul.f32 %v138, %v143
  %v145 = vadd.f32 %v135, %v144
  %146 = vset.pattern.permute.xlu0 12
  %147 = vperm.xlu0 %146, %v14
  %v148 = vpop.permute.xlu0 %147
  %v150 = vlaneseq
  %v151 = vshrl.u32 %v150, 7
  %v152 = vsub.s32 4, %v151
  %v153 = vrot.slane %v25, %v152
  %v154 = vmul.f32 %v148, %v153
  %v155 = vadd.f32 %v145, %v154
  %156 = vset.pattern.permute.xlu0 13
  %157 = vperm.xlu0 %156, %v14
  %v158 = vpop.permute.xlu0 %157
  %v160 = vlaneseq
  %v161 = vshrl.u32 %v160, 7
  %v162 = vsub.s32 5, %v161
  %v163 = vrot.slane %v25, %v162
  %v164 = vmul.f32 %v158, %v163
  %v165 = vadd.f32 %v155, %v164
  %166 = vset.pattern.permute.xlu0 14
  %167 = vperm.xlu0 %166, %v14
  %v168 = vpop.permute.xlu0 %167
  %v170 = vlaneseq
  %v171 = vshrl.u32 %v170, 7
  %v172 = vsub.s32 6, %v171
  %v173 = vrot.slane %v25, %v172
  %v174 = vmul.f32 %v168, %v173
  %v175 = vadd.f32 %v165, %v174
  %176 = vset.pattern.permute.xlu0 15
  %177 = vperm.xlu0 %176, %v14
  %v178 = vpop.permute.xlu0 %177
  %v180 = vlaneseq
  %v181 = vshrl.u32 %v180, 7
  %v182 = vsub.s32 7, %v181
  %v183 = vrot.slane %v25, %v182
  %v184 = vmul.f32 %v178, %v183
  %v185 = vadd.f32 %v175, %v184
  %187 = vset.pattern.permute.xlu0 0
  %188 = vperm.xlu0 %187, %v15
  %v189 = vpop.permute.xlu0 %188
  %v191 = vadd.f32 %v185, %v189
  %v192 = vmax.f32 %v191, 0.0
  %194 = vset.pattern.permute.xlu0 0
  %195 = vperm.xlu0 %194, %v16
  %v196 = vpop.permute.xlu0 %195
  %v198 = vlaneseq
  %v199 = vshrl.u32 %v198, 7
  %v200 = vsub.s32 0, %v199
  %v201 = vrot.slane %v192, %v200
  %v202 = vmul.f32 %v196, %v201
  %203 = vset.pattern.permute.xlu0 1
  %204 = vperm.xlu0 %203, %v16
  %v205 = vpop.permute.xlu0 %204
  %v207 = vlaneseq
  %v208 = vshrl.u32 %v207, 7
  %v209 = vsub.s32 1, %v208
  %v210 = vrot.slane %v192, %v209
  %v211 = vmul.f32 %v205, %v210
  %v212 = vadd.f32 %v202, %v211
  %213 = vset.pattern.permute.xlu0 2
  %214 = vperm.xlu0 %213, %v16
  %v215 = vpop.permute.xlu0 %214
  %v217 = vlaneseq
  %v218 = vshrl.u32 %v217, 7
  %v219 = vsub.s32 2, %v218
  %v220 = vrot.slane %v192, %v219
  %v221 = vmul.f32 %v215, %v220
  %v222 = vadd.f32 %v212, %v221
  %223 = vset.pattern.permute.xlu0 3
  %224 = vperm.xlu0 %223, %v16
  %v225 = vpop.permute.xlu0 %224
  %v227 = vlaneseq
  %v228 = vshrl.u32 %v227, 7
  %v229 = vsub.s32 3, %v228
  %v230 = vrot.slane %v192, %v229
  %v231 = vmul.f32 %v225, %v230
  %v232 = vadd.f32 %v222, %v231
  %233 = vset.pattern.permute.xlu0 4
  %234 = vperm.xlu0 %233, %v16
  %v235 = vpop.permute.xlu0 %234
  %v237 = vlaneseq
  %v238 = vshrl.u32 %v237, 7
  %v239 = vsub.s32 4, %v238
  %v240 = vrot.slane %v192, %v239
  %v241 = vmul.f32 %v235, %v240
  %v242 = vadd.f32 %v232, %v241
  %243 = vset.pattern.permute.xlu0 5
  %244 = vperm.xlu0 %243, %v16
  %v245 = vpop.permute.xlu0 %244
  %v247 = vlaneseq
  %v248 = vshrl.u32 %v247, 7
  %v249 = vsub.s32 5, %v248
  %v250 = vrot.slane %v192, %v249
  %v251 = vmul.f32 %v245, %v250
  %v252 = vadd.f32 %v242, %v251
  %253 = vset.pattern.permute.xlu0 6
  %254 = vperm.xlu0 %253, %v16
  %v255 = vpop.permute.xlu0 %254
  %v257 = vlaneseq
  %v258 = vshrl.u32 %v257, 7
  %v259 = vsub.s32 6, %v258
  %v260 = vrot.slane %v192, %v259
  %v261 = vmul.f32 %v255, %v260
  %v262 = vadd.f32 %v252, %v261
  %263 = vset.pattern.permute.xlu0 7
  %264 = vperm.xlu0 %263, %v16
  %v265 = vpop.permute.xlu0 %264
  %v267 = vlaneseq
  %v268 = vshrl.u32 %v267, 7
  %v269 = vsub.s32 7, %v268
  %v270 = vrot.slane %v192, %v269
  %v271 = vmul.f32 %v265, %v270
  %v272 = vadd.f32 %v262, %v271
  %273 = vset.pattern.permute.xlu0 1
  %274 = vperm.xlu0 %273, %v15
  %v275 = vpop.permute.xlu0 %274
  %v277 = vadd.f32 %v272, %v275
  %v278 = vmax.f32 %v277, 0.0
  %280 = vset.pattern.permute.xlu0 0
  %281 = vperm.xlu0 %280, %v17
  %v282 = vpop.permute.xlu0 %281
  %v284 = vlaneseq
  %v285 = vshrl.u32 %v284, 7
  %v286 = vsub.s32 0, %v285
  %v287 = vrot.slane %v278, %v286
  %v288 = vmul.f32 %v282, %v287
  %289 = vset.pattern.permute.xlu0 1
  %290 = vperm.xlu0 %289, %v17
  %v291 = vpop.permute.xlu0 %290
  %v293 = vlaneseq
  %v294 = vshrl.u32 %v293, 7
  %v295 = vsub.s32 1, %v294
  %v296 = vrot.slane %v278, %v295
  %v297 = vmul.f32 %v291, %v296
  %v298 = vadd.f32 %v288, %v297
  %299 = vset.pattern.permute.xlu0 2
  %300 = vperm.xlu0 %299, %v17
  %v301 = vpop.permute.xlu0 %300
  %v303 = vlaneseq
  %v304 = vshrl.u32 %v303, 7
  %v305 = vsub.s32 2, %v304
  %v306 = vrot.slane %v278, %v305
  %v307 = vmul.f32 %v301, %v306
  %v308 = vadd.f32 %v298, %v307
  %309 = vset.pattern.permute.xlu0 3
  %310 = vperm.xlu0 %309, %v17
  %v311 = vpop.permute.xlu0 %310
  %v313 = vlaneseq
  %v314 = vshrl.u32 %v313, 7
  %v315 = vsub.s32 3, %v314
  %v316 = vrot.slane %v278, %v315
  %v317 = vmul.f32 %v311, %v316
  %v318 = vadd.f32 %v308, %v317
  %319 = vset.pattern.permute.xlu0 4
  %320 = vperm.xlu0 %319, %v17
  %v321 = vpop.permute.xlu0 %320
  %v323 = vlaneseq
  %v324 = vshrl.u32 %v323, 7
  %v325 = vsub.s32 4, %v324
  %v326 = vrot.slane %v278, %v325
  %v327 = vmul.f32 %v321, %v326
  %v328 = vadd.f32 %v318, %v327
  %329 = vset.pattern.permute.xlu0 5
  %330 = vperm.xlu0 %329, %v17
  %v331 = vpop.permute.xlu0 %330
  %v333 = vlaneseq
  %v334 = vshrl.u32 %v333, 7
  %v335 = vsub.s32 5, %v334
  %v336 = vrot.slane %v278, %v335
  %v337 = vmul.f32 %v331, %v336
  %v338 = vadd.f32 %v328, %v337
  %339 = vset.pattern.permute.xlu0 6
  %340 = vperm.xlu0 %339, %v17
  %v341 = vpop.permute.xlu0 %340
  %v343 = vlaneseq
  %v344 = vshrl.u32 %v343, 7
  %v345 = vsub.s32 6, %v344
  %v346 = vrot.slane %v278, %v345
  %v347 = vmul.f32 %v341, %v346
  %v348 = vadd.f32 %v338, %v347
  %349 = vset.pattern.permute.xlu0 7
  %350 = vperm.xlu0 %349, %v17
  %v351 = vpop.permute.xlu0 %350
  %v353 = vlaneseq
  %v354 = vshrl.u32 %v353, 7
  %v355 = vsub.s32 7, %v354
  %v356 = vrot.slane %v278, %v355
  %v357 = vmul.f32 %v351, %v356
  %v358 = vadd.f32 %v348, %v357
  %359 = vset.pattern.permute.xlu0 2
  %360 = vperm.xlu0 %359, %v15
  %v361 = vpop.permute.xlu0 %360
  %v363 = vadd.f32 %v358, %v361
  %v364 = vmax.f32 %v363, 0.0
  %366 = vset.pattern.permute.xlu0 0
  %367 = vperm.xlu0 %366, %v18
  %v368 = vpop.permute.xlu0 %367
  %v370 = vlaneseq
  %v371 = vshrl.u32 %v370, 7
  %v372 = vsub.s32 0, %v371
  %v373 = vrot.slane %v364, %v372
  %v374 = vmul.f32 %v368, %v373
  %375 = vset.pattern.permute.xlu0 1
  %376 = vperm.xlu0 %375, %v18
  %v377 = vpop.permute.xlu0 %376
  %v379 = vlaneseq
  %v380 = vshrl.u32 %v379, 7
  %v381 = vsub.s32 1, %v380
  %v382 = vrot.slane %v364, %v381
  %v383 = vmul.f32 %v377, %v382
  %v384 = vadd.f32 %v374, %v383
  %385 = vset.pattern.permute.xlu0 2
  %386 = vperm.xlu0 %385, %v18
  %v387 = vpop.permute.xlu0 %386
  %v389 = vlaneseq
  %v390 = vshrl.u32 %v389, 7
  %v391 = vsub.s32 2, %v390
  %v392 = vrot.slane %v364, %v391
  %v393 = vmul.f32 %v387, %v392
  %v394 = vadd.f32 %v384, %v393
  %395 = vset.pattern.permute.xlu0 3
  %396 = vperm.xlu0 %395, %v18
  %v397 = vpop.permute.xlu0 %396
  %v399 = vlaneseq
  %v400 = vshrl.u32 %v399, 7
  %v401 = vsub.s32 3, %v400
  %v402 = vrot.slane %v364, %v401
  %v403 = vmul.f32 %v397, %v402
  %v404 = vadd.f32 %v394, %v403
  %405 = vset.pattern.permute.xlu0 4
  %406 = vperm.xlu0 %405, %v18
  %v407 = vpop.permute.xlu0 %406
  %v409 = vlaneseq
  %v410 = vshrl.u32 %v409, 7
  %v411 = vsub.s32 4, %v410
  %v412 = vrot.slane %v364, %v411
  %v413 = vmul.f32 %v407, %v412
  %v414 = vadd.f32 %v404, %v413
  %415 = vset.pattern.permute.xlu0 5
  %416 = vperm.xlu0 %415, %v18
  %v417 = vpop.permute.xlu0 %416
  %v419 = vlaneseq
  %v420 = vshrl.u32 %v419, 7
  %v421 = vsub.s32 5, %v420
  %v422 = vrot.slane %v364, %v421
  %v423 = vmul.f32 %v417, %v422
  %v424 = vadd.f32 %v414, %v423
  %425 = vset.pattern.permute.xlu0 6
  %426 = vperm.xlu0 %425, %v18
  %v427 = vpop.permute.xlu0 %426
  %v429 = vlaneseq
  %v430 = vshrl.u32 %v429, 7
  %v431 = vsub.s32 6, %v430
  %v432 = vrot.slane %v364, %v431
  %v433 = vmul.f32 %v427, %v432
  %v434 = vadd.f32 %v424, %v433
  %435 = vset.pattern.permute.xlu0 7
  %436 = vperm.xlu0 %435, %v18
  %v437 = vpop.permute.xlu0 %436
  %v439 = vlaneseq
  %v440 = vshrl.u32 %v439, 7
  %v441 = vsub.s32 7, %v440
  %v442 = vrot.slane %v364, %v441
  %v443 = vmul.f32 %v437, %v442
  %v444 = vadd.f32 %v434, %v443
  %445 = vset.pattern.permute.xlu0 3
  %446 = vperm.xlu0 %445, %v15
  %v447 = vpop.permute.xlu0 %446
  %v449 = vadd.f32 %v444, %v447
  %v450 = vmax.f32 %v449, 0.0
  %452 = vset.pattern.permute.xlu0 0
  %453 = vperm.xlu0 %452, %v19
  %v454 = vpop.permute.xlu0 %453
  %v456 = vlaneseq
  %v457 = vshrl.u32 %v456, 7
  %v458 = vsub.s32 0, %v457
  %v459 = vrot.slane %v450, %v458
  %v460 = vmul.f32 %v454, %v459
  %461 = vset.pattern.permute.xlu0 1
  %462 = vperm.xlu0 %461, %v19
  %v463 = vpop.permute.xlu0 %462
  %v465 = vlaneseq
  %v466 = vshrl.u32 %v465, 7
  %v467 = vsub.s32 1, %v466
  %v468 = vrot.slane %v450, %v467
  %v469 = vmul.f32 %v463, %v468
  %v470 = vadd.f32 %v460, %v469
  %471 = vset.pattern.permute.xlu0 2
  %472 = vperm.xlu0 %471, %v19
  %v473 = vpop.permute.xlu0 %472
  %v475 = vlaneseq
  %v476 = vshrl.u32 %v475, 7
  %v477 = vsub.s32 2, %v476
  %v478 = vrot.slane %v450, %v477
  %v479 = vmul.f32 %v473, %v478
  %v480 = vadd.f32 %v470, %v479
  %481 = vset.pattern.permute.xlu0 3
  %482 = vperm.xlu0 %481, %v19
  %v483 = vpop.permute.xlu0 %482
  %v485 = vlaneseq
  %v486 = vshrl.u32 %v485, 7
  %v487 = vsub.s32 3, %v486
  %v488 = vrot.slane %v450, %v487
  %v489 = vmul.f32 %v483, %v488
  %v490 = vadd.f32 %v480, %v489
  %491 = vset.pattern.permute.xlu0 4
  %492 = vperm.xlu0 %491, %v19
  %v493 = vpop.permute.xlu0 %492
  %v495 = vlaneseq
  %v496 = vshrl.u32 %v495, 7
  %v497 = vsub.s32 4, %v496
  %v498 = vrot.slane %v450, %v497
  %v499 = vmul.f32 %v493, %v498
  %v500 = vadd.f32 %v490, %v499
  %501 = vset.pattern.permute.xlu0 5
  %502 = vperm.xlu0 %501, %v19
  %v503 = vpop.permute.xlu0 %502
  %v505 = vlaneseq
  %v506 = vshrl.u32 %v505, 7
  %v507 = vsub.s32 5, %v506
  %v508 = vrot.slane %v450, %v507
  %v509 = vmul.f32 %v503, %v508
  %v510 = vadd.f32 %v500, %v509
  %511 = vset.pattern.permute.xlu0 6
  %512 = vperm.xlu0 %511, %v19
  %v513 = vpop.permute.xlu0 %512
  %v515 = vlaneseq
  %v516 = vshrl.u32 %v515, 7
  %v517 = vsub.s32 6, %v516
  %v518 = vrot.slane %v450, %v517
  %v519 = vmul.f32 %v513, %v518
  %v520 = vadd.f32 %v510, %v519
  %521 = vset.pattern.permute.xlu0 7
  %522 = vperm.xlu0 %521, %v19
  %v523 = vpop.permute.xlu0 %522
  %v525 = vlaneseq
  %v526 = vshrl.u32 %v525, 7
  %v527 = vsub.s32 7, %v526
  %v528 = vrot.slane %v450, %v527
  %v529 = vmul.f32 %v523, %v528
  %v530 = vadd.f32 %v520, %v529
  %531 = vset.pattern.permute.xlu0 4
  %532 = vperm.xlu0 %531, %v15
  %v533 = vpop.permute.xlu0 %532
  %v535 = vadd.f32 %v530, %v533
  %v536 = vmax.f32 %v535, 0.0
  %538 = vset.pattern.permute.xlu0 0
  %539 = vperm.xlu0 %538, %v20
  %v540 = vpop.permute.xlu0 %539
  %v542 = vlaneseq
  %v543 = vshrl.u32 %v542, 7
  %v544 = vsub.s32 0, %v543
  %v545 = vrot.slane %v536, %v544
  %v546 = vmul.f32 %v540, %v545
  %547 = vset.pattern.permute.xlu0 1
  %548 = vperm.xlu0 %547, %v20
  %v549 = vpop.permute.xlu0 %548
  %v551 = vlaneseq
  %v552 = vshrl.u32 %v551, 7
  %v553 = vsub.s32 1, %v552
  %v554 = vrot.slane %v536, %v553
  %v555 = vmul.f32 %v549, %v554
  %v556 = vadd.f32 %v546, %v555
  %557 = vset.pattern.permute.xlu0 2
  %558 = vperm.xlu0 %557, %v20
  %v559 = vpop.permute.xlu0 %558
  %v561 = vlaneseq
  %v562 = vshrl.u32 %v561, 7
  %v563 = vsub.s32 2, %v562
  %v564 = vrot.slane %v536, %v563
  %v565 = vmul.f32 %v559, %v564
  %v566 = vadd.f32 %v556, %v565
  %567 = vset.pattern.permute.xlu0 3
  %568 = vperm.xlu0 %567, %v20
  %v569 = vpop.permute.xlu0 %568
  %v571 = vlaneseq
  %v572 = vshrl.u32 %v571, 7
  %v573 = vsub.s32 3, %v572
  %v574 = vrot.slane %v536, %v573
  %v575 = vmul.f32 %v569, %v574
  %v576 = vadd.f32 %v566, %v575
  %577 = vset.pattern.permute.xlu0 4
  %578 = vperm.xlu0 %577, %v20
  %v579 = vpop.permute.xlu0 %578
  %v581 = vlaneseq
  %v582 = vshrl.u32 %v581, 7
  %v583 = vsub.s32 4, %v582
  %v584 = vrot.slane %v536, %v583
  %v585 = vmul.f32 %v579, %v584
  %v586 = vadd.f32 %v576, %v585
  %587 = vset.pattern.permute.xlu0 5
  %588 = vperm.xlu0 %587, %v20
  %v589 = vpop.permute.xlu0 %588
  %v591 = vlaneseq
  %v592 = vshrl.u32 %v591, 7
  %v593 = vsub.s32 5, %v592
  %v594 = vrot.slane %v536, %v593
  %v595 = vmul.f32 %v589, %v594
  %v596 = vadd.f32 %v586, %v595
  %597 = vset.pattern.permute.xlu0 6
  %598 = vperm.xlu0 %597, %v20
  %v599 = vpop.permute.xlu0 %598
  %v601 = vlaneseq
  %v602 = vshrl.u32 %v601, 7
  %v603 = vsub.s32 6, %v602
  %v604 = vrot.slane %v536, %v603
  %v605 = vmul.f32 %v599, %v604
  %v606 = vadd.f32 %v596, %v605
  %607 = vset.pattern.permute.xlu0 7
  %608 = vperm.xlu0 %607, %v20
  %v609 = vpop.permute.xlu0 %608
  %v611 = vlaneseq
  %v612 = vshrl.u32 %v611, 7
  %v613 = vsub.s32 7, %v612
  %v614 = vrot.slane %v536, %v613
  %v615 = vmul.f32 %v609, %v614
  %v616 = vadd.f32 %v606, %v615
  %617 = vset.pattern.permute.xlu0 5
  %618 = vperm.xlu0 %617, %v15
  %v619 = vpop.permute.xlu0 %618
  %v621 = vadd.f32 %v616, %v619
  %v622 = vmax.f32 %v621, 0.0
  %624 = vset.pattern.permute.xlu0 0
  %625 = vperm.xlu0 %624, %v21
  %v626 = vpop.permute.xlu0 %625
  %v628 = vlaneseq
  %v629 = vshrl.u32 %v628, 7
  %v630 = vsub.s32 0, %v629
  %v631 = vrot.slane %v622, %v630
  %v632 = vmul.f32 %v626, %v631
  %633 = vset.pattern.permute.xlu0 1
  %634 = vperm.xlu0 %633, %v21
  %v635 = vpop.permute.xlu0 %634
  %v637 = vlaneseq
  %v638 = vshrl.u32 %v637, 7
  %v639 = vsub.s32 1, %v638
  %v640 = vrot.slane %v622, %v639
  %v641 = vmul.f32 %v635, %v640
  %v642 = vadd.f32 %v632, %v641
  %643 = vset.pattern.permute.xlu0 2
  %644 = vperm.xlu0 %643, %v21
  %v645 = vpop.permute.xlu0 %644
  %v647 = vlaneseq
  %v648 = vshrl.u32 %v647, 7
  %v649 = vsub.s32 2, %v648
  %v650 = vrot.slane %v622, %v649
  %v651 = vmul.f32 %v645, %v650
  %v652 = vadd.f32 %v642, %v651
  %653 = vset.pattern.permute.xlu0 3
  %654 = vperm.xlu0 %653, %v21
  %v655 = vpop.permute.xlu0 %654
  %v657 = vlaneseq
  %v658 = vshrl.u32 %v657, 7
  %v659 = vsub.s32 3, %v658
  %v660 = vrot.slane %v622, %v659
  %v661 = vmul.f32 %v655, %v660
  %v662 = vadd.f32 %v652, %v661
  %663 = vset.pattern.permute.xlu0 4
  %664 = vperm.xlu0 %663, %v21
  %v665 = vpop.permute.xlu0 %664
  %v667 = vlaneseq
  %v668 = vshrl.u32 %v667, 7
  %v669 = vsub.s32 4, %v668
  %v670 = vrot.slane %v622, %v669
  %v671 = vmul.f32 %v665, %v670
  %v672 = vadd.f32 %v662, %v671
  %673 = vset.pattern.permute.xlu0 5
  %674 = vperm.xlu0 %673, %v21
  %v675 = vpop.permute.xlu0 %674
  %v677 = vlaneseq
  %v678 = vshrl.u32 %v677, 7
  %v679 = vsub.s32 5, %v678
  %v680 = vrot.slane %v622, %v679
  %v681 = vmul.f32 %v675, %v680
  %v682 = vadd.f32 %v672, %v681
  %683 = vset.pattern.permute.xlu0 6
  %684 = vperm.xlu0 %683, %v21
  %v685 = vpop.permute.xlu0 %684
  %v687 = vlaneseq
  %v688 = vshrl.u32 %v687, 7
  %v689 = vsub.s32 6, %v688
  %v690 = vrot.slane %v622, %v689
  %v691 = vmul.f32 %v685, %v690
  %v692 = vadd.f32 %v682, %v691
  %693 = vset.pattern.permute.xlu0 7
  %694 = vperm.xlu0 %693, %v21
  %v695 = vpop.permute.xlu0 %694
  %v697 = vlaneseq
  %v698 = vshrl.u32 %v697, 7
  %v699 = vsub.s32 7, %v698
  %v700 = vrot.slane %v622, %v699
  %v701 = vmul.f32 %v695, %v700
  %v702 = vadd.f32 %v692, %v701
  %703 = vset.pattern.permute.xlu0 6
  %704 = vperm.xlu0 %703, %v15
  %v705 = vpop.permute.xlu0 %704
  %v707 = vadd.f32 %v702, %v705
  %v708 = vmax.f32 %v707, 0.0
  %710 = vset.pattern.permute.xlu0 0
  %711 = vperm.xlu0 %710, %v22
  %v712 = vpop.permute.xlu0 %711
  %v714 = vmul.f32 %v708, %v712
  %v715 = vrot.slane %v714, 4
  %v716 = vadd.f32 %v714, %v715
  %v717 = vrot.slane %v716, 2
  %v718 = vadd.f32 %v716, %v717
  %v719 = vrot.slane %v718, 1
  %v720 = vadd.f32 %v718, %v719
  %722 = vset.pattern.permute.xlu0 7
  %723 = vperm.xlu0 %722, %v23
  %v724 = vpop.permute.xlu0 %723
  %v726 = vadd.f32 %v720, %v724
  %v727 = vand.u32 2147483647, %v726
  %v728 = vsub.f32 0.0, %v727
  %v729 = vmul.f32 %v728, 1.442695
  %v730 = vpow.pop %v729
  %vm731 = vcmp.ge.f32.partialorder %v726, 0.0
  %v732 = vsel %vm731, 1.0, %v730
  %v733 = vadd.f32 %v730, 1.0
  %v734 = vrcp.pop %v733
  %v735 = vmul.f32 %v732, %v734
  %736 = vst [vmem:[%s3] sm:$0x1] %v735
  // Predicated region
  $region14: #{ffnn_classification_c.1} parent=0 // pred_check
    _
  $region15: #{ffnn_classification_c.1} parent=0 // pred_check_branch
    %738 = sbr.rel (0) target = $region17
  $region16: #{ffnn_classification_c.1} parent=0 // pred_region
    _
  $region17: #{ffnn_classification_c.1} parent=0 // pred_fallthru
    _
  // Predicated region
  $region18: #{ffnn_classification_c.1} parent=0 // pred_check
    _
  $region19: #{ffnn_classification_c.1} parent=0 // pred_check_branch
    %740 = sbr.rel (0) target = $region21
  $region20: #{ffnn_classification_c.1} parent=0 // pred_region
    _
  $region21: #{ffnn_classification_c.1} parent=0 // pred_fallthru
    _

</llo_original>
